<compile_context>
chip_gen: v5e
topology: v5e:2x2
jax: 0.10.0
libtpu: 0.0.40
codegen_flags: <defaults>
</compile_context>

<pallas_src>
import jax
import jax.numpy as jnp
from jax import lax
from jax.experimental import pallas as pl
from jax.experimental.pallas import tpu as pltpu


def _round_up(a, b):
    return (a + b - 1) // b * b


def _project_qkv(x_p, wq_t, wk_t, wv_t, *, scale, blk):
    """Q = (x @ Wq) * scale, K = x @ Wk, V = x @ Wv, tiled over the sequence."""
    t_p, d_in_p = x_p.shape
    d_out_p = wq_t.shape[1]
    dtype = x_p.dtype

    def kernel(x_ref, wq_ref, wk_ref, wv_ref, q_ref, k_ref, v_ref):
        x = x_ref[...]
        q = jnp.dot(x, wq_ref[...], preferred_element_type=jnp.float32)
        q_ref[...] = (q * scale).astype(q_ref.dtype)
        k_ref[...] = jnp.dot(
            x, wk_ref[...], preferred_element_type=jnp.float32).astype(k_ref.dtype)
        v_ref[...] = jnp.dot(
            x, wv_ref[...], preferred_element_type=jnp.float32).astype(v_ref.dtype)

    w_spec = pl.BlockSpec((d_in_p, d_out_p), lambda i: (0, 0))
    seq_spec = pl.BlockSpec((blk, d_out_p), lambda i: (i, 0))
    return pl.pallas_call(
        kernel,
        grid=(t_p // blk,),
        in_specs=[pl.BlockSpec((blk, d_in_p), lambda i: (i, 0)),
                  w_spec, w_spec, w_spec],
        out_specs=(seq_spec, seq_spec, seq_spec),
        out_shape=tuple(jax.ShapeDtypeStruct((t_p, d_out_p), dtype)
                        for _ in range(3)),
        compiler_params=pltpu.CompilerParams(
            dimension_semantics=("parallel",)),
    )(x_p, wq_t, wk_t, wv_t)


def _flash_attention(q, k, v, *, t_actual, blk):
    """softmax(q @ k^T) @ v with online softmax; q is pre-scaled by 1/sqrt(d)."""
    t_p, d_out_p = q.shape
    n_kv = t_p // blk
    needs_mask = t_p != t_actual  # static: only if the sequence was padded

    def kernel(q_ref, k_ref, v_ref, o_ref, m_sc, l_sc, acc_sc):
        kv = pl.program_id(1)

        @pl.when(kv == 0)
        def _():
            m_sc[...] = jnp.full_like(m_sc, -jnp.inf)
            l_sc[...] = jnp.zeros_like(l_sc)
            acc_sc[...] = jnp.zeros_like(acc_sc)

        # (blk, blk) score tile; contract feature axes directly (no k.T copy).
        s = lax.dot_general(q_ref[...], k_ref[...],
                            dimension_numbers=(((1,), (1,)), ((), ())),
                            preferred_element_type=jnp.float32)

        if needs_mask:
            key_idx = kv * blk + lax.broadcasted_iota(jnp.int32, s.shape, 1)
            s = jnp.where(key_idx < t_actual, s, -jnp.inf)

        m_prev = m_sc[...]
        m_new = jnp.maximum(m_prev, s.max(axis=-1, keepdims=True))
        alpha = jnp.exp(m_prev - m_new)
        p = jnp.exp(s - m_new)
        l_sc[...] = alpha * l_sc[...] + p.sum(axis=-1, keepdims=True)
        acc_sc[...] = alpha * acc_sc[...] + jnp.dot(
            p.astype(v_ref.dtype), v_ref[...],
            preferred_element_type=jnp.float32)
        m_sc[...] = m_new

        @pl.when(kv == n_kv - 1)
        def _():
            inv_l = pl.reciprocal(l_sc[...], approx=True)   # EUP, off the VALU
            o_ref[...] = (acc_sc[...] * inv_l).astype(o_ref.dtype)

    return pl.pallas_call(
        kernel,
        grid=(t_p // blk, n_kv),
        in_specs=[pl.BlockSpec((blk, d_out_p), lambda i, j: (i, 0)),
                  pl.BlockSpec((blk, d_out_p), lambda i, j: (j, 0)),
                  pl.BlockSpec((blk, d_out_p), lambda i, j: (j, 0))],
        out_specs=pl.BlockSpec((blk, d_out_p), lambda i, j: (i, 0)),
        out_shape=jax.ShapeDtypeStruct((t_p, d_out_p), q.dtype),
        scratch_shapes=[pltpu.VMEM((blk, 1), jnp.float32),      # running max
                        pltpu.VMEM((blk, 1), jnp.float32),      # running denom
                        pltpu.VMEM((blk, d_out_p), jnp.float32)],  # accumulator
        compiler_params=pltpu.CompilerParams(
            dimension_semantics=("parallel", "arbitrary")),
    )(q, k, v)


def self_attention_v2(x, w_query, w_key, w_value, *, blk_t=512):
    """x: (T, d_in); w_*: (d_out, d_in) like nn.Linear.weight (no bias)."""
    t, d_in = x.shape
    d_out = w_query.shape[0]
    dtype = x.dtype
    scale = 1.0 / (d_out ** 0.5)          # keys.shape[-1] ** 0.5

    # Lane-dense padded layout: features -> multiple of 128, seq -> tile multiple.
    d_in_p = _round_up(d_in, 128)
    d_out_p = _round_up(d_out, 128)
    blk = _round_up(min(blk_t, _round_up(t, 8)), 8)
    t_p = _round_up(t, blk)               # guarantees t_p - t < blk

    x_p = jnp.pad(x, ((0, t_p - t), (0, d_in_p - d_in)))

    def pad_w(w):  # (d_out, d_in) -> (d_in_p, d_out_p), pre-transposed, zero-padded
        return jnp.pad(w.T.astype(dtype),
                       ((0, d_in_p - d_in), (0, d_out_p - d_out)))

    q, k, v = _project_qkv(x_p, pad_w(w_query), pad_w(w_key), pad_w(w_value),
                           scale=scale, blk=blk)
    out_p = _flash_attention(q, k, v, t_actual=t, blk=blk)
    return out_p[:t, :d_out]


def self_attention_v2_ref(x, w_query, w_key, w_value):
    """Pure-JAX reference mirroring the PyTorch forward."""
    q = x @ w_query.T
    k = x @ w_key.T
    v = x @ w_value.T
    scores = q @ k.T
    w = jax.nn.softmax(scores / (k.shape[-1] ** 0.5), axis=-1)
    return w @ v


if __name__ == "__main__":
    # Inputs from the chapter example: (T=6, d_in=3), d_out=2.
    x = jnp.array(
        [[0.43, 0.15, 0.89],
         [0.55, 0.87, 0.66],
         [0.57, 0.85, 0.64],
         [0.22, 0.58, 0.33],
         [0.77, 0.25, 0.10],
         [0.05, 0.80, 0.55]], dtype=jnp.float32)

    d_in = x.shape[1]
    d_out = 2

    # Deterministic init matching nn.Linear(d_in, d_out, bias=False):
    # weight shape (d_out, d_in), uniform(-1/sqrt(d_in), 1/sqrt(d_in)).
    key = jax.random.PRNGKey(0)
    k_q, k_k, k_v = jax.random.split(key, 3)
    bound = 1.0 / (d_in ** 0.5)
    w_query = jax.random.uniform(k_q, (d_out, d_in), jnp.float32, -bound, bound)
    w_key = jax.random.uniform(k_k, (d_out, d_in), jnp.float32, -bound, bound)
    w_value = jax.random.uniform(k_v, (d_out, d_in), jnp.float32, -bound, bound)

    out = jax.block_until_ready(self_attention_v2(x, w_query, w_key, w_value))
    ref = self_attention_v2_ref(x, w_query, w_key, w_value)

    assert out.shape == (x.shape[0], d_out)
    # Tolerance accounts for the EUP approximate reciprocal in the finalize step.
    assert jnp.allclose(out, ref, atol=2e-3, rtol=2e-3), (out, ref)

    print("KERNEL_OK")
</pallas_src>

<mosaic_0001>
module attributes {stable_mosaic.version = 11 : i64} {
  func.func @kernel(%arg0: i32, %arg1: memref<8x128xf32, #tpu.memory_space<vmem>>, %arg2: memref<128x128xf32, #tpu.memory_space<vmem>>, %arg3: memref<128x128xf32, #tpu.memory_space<vmem>>, %arg4: memref<128x128xf32, #tpu.memory_space<vmem>>, %arg5: memref<8x128xf32, #tpu.memory_space<vmem>>, %arg6: memref<8x128xf32, #tpu.memory_space<vmem>>, %arg7: memref<8x128xf32, #tpu.memory_space<vmem>>) attributes {dimension_semantics = [#tpu.dimension_semantics<parallel>], iteration_bounds = array<i64: 1>, scalar_prefetch = 0 : i64, scratch_operands = 0 : i64, tpu.core_type = #tpu.core_type<tc>, window_params = [{transform_indices = @transform_0, window_bounds = array<i64: 8, 128>}, {pipeline_mode = #tpu.pipeline_mode<synchronous>, transform_indices = @transform_1, window_bounds = array<i64: 128, 128>}, {pipeline_mode = #tpu.pipeline_mode<synchronous>, transform_indices = @transform_2, window_bounds = array<i64: 128, 128>}, {pipeline_mode = #tpu.pipeline_mode<synchronous>, transform_indices = @transform_3, window_bounds = array<i64: 128, 128>}, {transform_indices = @transform_4, window_bounds = array<i64: 8, 128>}, {transform_indices = @transform_5, window_bounds = array<i64: 8, 128>}, {transform_indices = @transform_6, window_bounds = array<i64: 8, 128>}]} {
    %c0 = arith.constant 0 : index
    %c0_0 = arith.constant 0 : index
    %0 = vector.load %arg1[%c0, %c0_0] : memref<8x128xf32, #tpu.memory_space<vmem>>, vector<8x128xf32>
    %c0_1 = arith.constant 0 : index
    %c0_2 = arith.constant 0 : index
    %1 = vector.load %arg2[%c0_1, %c0_2] : memref<128x128xf32, #tpu.memory_space<vmem>>, vector<128x128xf32>
    %cst = arith.constant dense<0.000000e+00> : vector<8x128xf32>
    %2 = tpu.matmul %0, %1, %cst {dimension_numbers = #tpu.dot_dimension_numbers<[1], [0], [0], [1], [0, 0, 1, 1], [], []>} : vector<8x128xf32>, vector<128x128xf32>, vector<8x128xf32> -> vector<8x128xf32>
    %cst_3 = arith.constant 0.707106769 : f32
    %3 = vector.broadcast %cst_3 : f32 to vector<8x128xf32>
    %4 = arith.mulf %2, %3 : vector<8x128xf32>
    %c0_4 = arith.constant 0 : index
    %c0_5 = arith.constant 0 : index
    %5 = vector.load %arg5[%c0_4, %c0_5] : memref<8x128xf32, #tpu.memory_space<vmem>>, vector<8x128xf32>
    tpu.vector_store %arg5[%c0_4, %c0_5], %4 {strides = array<i32>} : memref<8x128xf32, #tpu.memory_space<vmem>>, vector<8x128xf32>,
    %c0_6 = arith.constant 0 : index
    %c0_7 = arith.constant 0 : index
    %6 = vector.load %arg3[%c0_6, %c0_7] : memref<128x128xf32, #tpu.memory_space<vmem>>, vector<128x128xf32>
    %cst_8 = arith.constant dense<0.000000e+00> : vector<8x128xf32>
    %7 = tpu.matmul %0, %6, %cst_8 {dimension_numbers = #tpu.dot_dimension_numbers<[1], [0], [0], [1], [0, 0, 1, 1], [], []>} : vector<8x128xf32>, vector<128x128xf32>, vector<8x128xf32> -> vector<8x128xf32>
    %c0_9 = arith.constant 0 : index
    %c0_10 = arith.constant 0 : index
    %8 = vector.load %arg6[%c0_9, %c0_10] : memref<8x128xf32, #tpu.memory_space<vmem>>, vector<8x128xf32>
    tpu.vector_store %arg6[%c0_9, %c0_10], %7 {strides = array<i32>} : memref<8x128xf32, #tpu.memory_space<vmem>>, vector<8x128xf32>,
    %c0_11 = arith.constant 0 : index
    %c0_12 = arith.constant 0 : index
    %9 = vector.load %arg4[%c0_11, %c0_12] : memref<128x128xf32, #tpu.memory_space<vmem>>, vector<128x128xf32>
    %cst_13 = arith.constant dense<0.000000e+00> : vector<8x128xf32>
    %10 = tpu.matmul %0, %9, %cst_13 {dimension_numbers = #tpu.dot_dimension_numbers<[1], [0], [0], [1], [0, 0, 1, 1], [], []>} : vector<8x128xf32>, vector<128x128xf32>, vector<8x128xf32> -> vector<8x128xf32>
    %c0_14 = arith.constant 0 : index
    %c0_15 = arith.constant 0 : index
    %11 = vector.load %arg7[%c0_14, %c0_15] : memref<8x128xf32, #tpu.memory_space<vmem>>, vector<8x128xf32>
    tpu.vector_store %arg7[%c0_14, %c0_15], %10 {strides = array<i32>} : memref<8x128xf32, #tpu.memory_space<vmem>>, vector<8x128xf32>,
    return
  }
  func.func @transform_0(%arg0: i32) -> (i32, i32) {
    %c0_i32 = arith.constant 0 : i32
    %c0_i32_0 = arith.constant 0 : i32
    return %arg0, %c0_i32 : i32, i32
  }
  func.func @transform_1(%arg0: i32) -> (i32, i32) {
    %c0_i32 = arith.constant 0 : i32
    %c0_i32_0 = arith.constant 0 : i32
    %c0_i32_1 = arith.constant 0 : i32
    return %c0_i32, %c0_i32_0 : i32, i32
  }
  func.func @transform_2(%arg0: i32) -> (i32, i32) {
    %c0_i32 = arith.constant 0 : i32
    %c0_i32_0 = arith.constant 0 : i32
    %c0_i32_1 = arith.constant 0 : i32
    return %c0_i32, %c0_i32_0 : i32, i32
  }
  func.func @transform_3(%arg0: i32) -> (i32, i32) {
    %c0_i32 = arith.constant 0 : i32
    %c0_i32_0 = arith.constant 0 : i32
    %c0_i32_1 = arith.constant 0 : i32
    return %c0_i32, %c0_i32_0 : i32, i32
  }
  func.func @transform_4(%arg0: i32) -> (i32, i32) {
    %c0_i32 = arith.constant 0 : i32
    %c0_i32_0 = arith.constant 0 : i32
    return %arg0, %c0_i32 : i32, i32
  }
  func.func @transform_5(%arg0: i32) -> (i32, i32) {
    %c0_i32 = arith.constant 0 : i32
    %c0_i32_0 = arith.constant 0 : i32
    return %arg0, %c0_i32 : i32, i32
  }
  func.func @transform_6(%arg0: i32) -> (i32, i32) {
    %c0_i32 = arith.constant 0 : i32
    %c0_i32_0 = arith.constant 0 : i32
    return %arg0, %c0_i32 : i32, i32
  }
}

</mosaic_0001>

<llo_original>
// kernel: tpu_custom_call.1
$region0: #{tpu_custom_call.1}
  #allocation0 [shape = 'u32[]', space=smem, size = 0x4, offset = 0x4, fixed_abs, tag = 'smem constant byte address 0x4 - core index']
  #allocation1 [shape = 'u32[72,128]{1,0:T(1,128)}', space=vmem, size = 0x9000, scoped, tag = 'internal scratch']
  %s0 = inlined_call_operand.hbm [shape: f32[8,128], index: 0, kind: input, shape index: {}]
  %s1 = inlined_call_operand.hbm [shape: f32[128,128], index: 1, kind: input, shape index: {}]
  %s2 = inlined_call_operand.hbm [shape: f32[128,128], index: 2, kind: input, shape index: {}]
  %s3 = inlined_call_operand.hbm [shape: f32[128,128], index: 3, kind: input, shape index: {}]
  %s4 = inlined_call_operand.hbm [shape: f32[8,128], index: 4, kind: output, shape index: {0}]
  %s5 = inlined_call_operand.hbm [shape: f32[8,128], index: 5, kind: output, shape index: {1}]
  %s6 = inlined_call_operand.hbm [shape: f32[8,128], index: 6, kind: output, shape index: {2}]
  %7 = xla_tuple %s4, %s5, %s6
  %s8 = sld [smem:[#allocation0]]
  $region58: #{tpu_custom_call.1} parent=0
    _
  %s10 = ssub.s32 1, %s8
  %s11 = scalar_select 0, %s10, %s8
  $region1: #{tpu_custom_call.1} parent=0
    #allocation2 [shape = 'u8[4096]{0}', space=vmem, size = 0x1000, scoped, tag = 'input window, operand 0, single buffered']
    #allocation3 [shape = 's32[1]{0}', space=sflag, size = 0x4, scoped, tag = 'scoped memory for tpu_custom_call.1']
    #allocation4 [shape = 's32[1]{0}', space=sflag, size = 0x4, scoped, tag = 'scoped memory for tpu_custom_call.1']
    #allocation5 [shape = 'u8[65536]{0}', space=vmem, size = 0x10000, scoped, tag = 'input window, operand 1, single buffered']
    #allocation6 [shape = 's32[1]{0}', space=sflag, size = 0x4, scoped, tag = 'scoped memory for tpu_custom_call.1']
    #allocation7 [shape = 'u8[65536]{0}', space=vmem, size = 0x10000, scoped, tag = 'input window, operand 2, single buffered']
    #allocation8 [shape = 'u8[65536]{0}', space=vmem, size = 0x10000, scoped, tag = 'input window, operand 3, single buffered']
    #allocation9 [shape = 's32[1]{0}', space=sflag, size = 0x4, scoped, tag = 'scoped memory for tpu_custom_call.1']
    #allocation10 [shape = 'u8[4096]{0}', space=vmem, size = 0x1000, scoped, tag = 'output window, operand 0, single buffered']
    #allocation11 [shape = 'u8[4096]{0}', space=vmem, size = 0x1000, scoped, tag = 'output window, operand 1, single buffered']
    #allocation12 [shape = 's32[1]{0}', space=sflag, size = 0x4, scoped, tag = 'scoped memory for tpu_custom_call.1']
    #allocation13 [shape = 'u8[4096]{0}', space=vmem, size = 0x1000, scoped, tag = 'output window, operand 2, single buffered']
    %12 = vsyncpa [#allocation3], 0
    %13 = vsyncpa [#allocation6], 0
    %14 = vsyncpa [#allocation9], 0
    %15 = vsyncpa [#allocation4], 0
    %16 = vsyncpa [#allocation12], 0
    // Predicated region
    $region2: #{tpu_custom_call.1} parent=1 // pred_check
      _
    $region3: #{tpu_custom_call.1} parent=1 // pred_check_branch
      %18 = sbr.rel (0) target = $region5
    $region4: #{tpu_custom_call.1} parent=1 // pred_region
      %20 = vsyncadd [#allocation3], 0
      %s22 = sshll.u32 %s0, 4
      %s23 = int_to_ptr.hbm [resolvable:$true] %s22
      %s24 = sshll.u32 [#allocation2], 4
      %s25 = int_to_ptr.vmem [resolvable:$true] %s24
      %27 = dma.hbm_to_vmem [thread:$0]  %s23, 128, %s25, [#allocation3]
    $region5: #{tpu_custom_call.1} parent=1 // pred_fallthru
      _
    // Predicated region
    $region6: #{tpu_custom_call.1} parent=1 // pred_check
      _
    $region7: #{tpu_custom_call.1} parent=1 // pred_check_branch
      %29 = sbr.rel (0) target = $region9
    $region8: #{tpu_custom_call.1} parent=1 // pred_region
      %31 = vsyncadd [#allocation6], 0
      %s32 = sshll.u32 %s1, 4
      %s33 = int_to_ptr.hbm [resolvable:$true] %s32
      %s34 = sshll.u32 [#allocation5], 4
      %s35 = int_to_ptr.vmem [resolvable:$true] %s34
      %40 = dma.hbm_to_vmem [thread:$0]  %s33, 2048, %s35, [#allocation6], 128, 128, 8
    $region9: #{tpu_custom_call.1} parent=1 // pred_fallthru
      _
    // Predicated region
    $region10: #{tpu_custom_call.1} parent=1 // pred_check
      _
    $region11: #{tpu_custom_call.1} parent=1 // pred_check_branch
      %42 = sbr.rel (0) target = $region13
    $region12: #{tpu_custom_call.1} parent=1 // pred_region
      %44 = vsyncadd [#allocation6], 0
      %s45 = sshll.u32 %s2, 4
      %s46 = int_to_ptr.hbm [resolvable:$true] %s45
      %s47 = sshll.u32 [#allocation7], 4
      %s48 = int_to_ptr.vmem [resolvable:$true] %s47
      %53 = dma.hbm_to_vmem [thread:$0]  %s46, 2048, %s48, [#allocation6], 128, 128, 8
    $region13: #{tpu_custom_call.1} parent=1 // pred_fallthru
      _
    // Predicated region
    $region14: #{tpu_custom_call.1} parent=1 // pred_check
      _
    $region15: #{tpu_custom_call.1} parent=1 // pred_check_branch
      %55 = sbr.rel (0) target = $region17
    $region16: #{tpu_custom_call.1} parent=1 // pred_region
      %57 = vsyncadd [#allocation9], 0
      %s58 = sshll.u32 %s3, 4
      %s59 = int_to_ptr.hbm [resolvable:$true] %s58
      %s60 = sshll.u32 [#allocation8], 4
      %s61 = int_to_ptr.vmem [resolvable:$true] %s60
      %66 = dma.hbm_to_vmem [thread:$0]  %s59, 2048, %s61, [#allocation9], 128, 128, 8
    $region17: #{tpu_custom_call.1} parent=1 // pred_fallthru
      _
    // Predicated region
    $region18: #{tpu_custom_call.1} parent=1 // pred_check
      _
    $region19: #{tpu_custom_call.1} parent=1 // pred_check_branch
      %68 = sbr.rel (0) target = $region21
    $region20: #{tpu_custom_call.1} parent=1 // pred_region
      %70 = dma.done [#allocation3], 128
    $region21: #{tpu_custom_call.1} parent=1 // pred_fallthru
      _
    // Predicated region
    $region22: #{tpu_custom_call.1} parent=1 // pred_check
      _
    $region23: #{tpu_custom_call.1} parent=1 // pred_check_branch
      %72 = sbr.rel (0) target = $region25
    $region24: #{tpu_custom_call.1} parent=1 // pred_region
      %74 = dma.done [#allocation6], 2048
    $region25: #{tpu_custom_call.1} parent=1 // pred_fallthru
      _
    // Predicated region
    $region26: #{tpu_custom_call.1} parent=1 // pred_check
      _
    $region27: #{tpu_custom_call.1} parent=1 // pred_check_branch
      %76 = sbr.rel (0) target = $region29
    $region28: #{tpu_custom_call.1} parent=1 // pred_region
      %78 = dma.done [#allocation6], 2048
    $region29: #{tpu_custom_call.1} parent=1 // pred_fallthru
      _
    // Predicated region
    $region30: #{tpu_custom_call.1} parent=1 // pred_check
      _
    $region31: #{tpu_custom_call.1} parent=1 // pred_check_branch
      %80 = sbr.rel (0) target = $region33
    $region32: #{tpu_custom_call.1} parent=1 // pred_region
      %82 = dma.done [#allocation9], 2048
    $region33: #{tpu_custom_call.1} parent=1 // pred_fallthru
      _
    %v83 = vld [vmem:[#allocation2] sm:$0xff]
    %v84 = vld [vmem:[#allocation5] sm:$0xff]
    %v85 = vld [vmem:[#allocation5 + $0x8] sm:$0xff]
    %v86 = vld [vmem:[#allocation5 + $0x10] sm:$0xff]
    %v87 = vld [vmem:[#allocation5 + $0x18] sm:$0xff]
    %v88 = vld [vmem:[#allocation5 + $0x20] sm:$0xff]
    %v89 = vld [vmem:[#allocation5 + $0x28] sm:$0xff]
    %v90 = vld [vmem:[#allocation5 + $0x30] sm:$0xff]
    %v91 = vld [vmem:[#allocation5 + $0x38] sm:$0xff]
    %v92 = vld [vmem:[#allocation5 + $0x40] sm:$0xff]
    %v93 = vld [vmem:[#allocation5 + $0x48] sm:$0xff]
    %v94 = vld [vmem:[#allocation5 + $0x50] sm:$0xff]
    %v95 = vld [vmem:[#allocation5 + $0x58] sm:$0xff]
    %v96 = vld [vmem:[#allocation5 + $0x60] sm:$0xff]
    %v97 = vld [vmem:[#allocation5 + $0x68] sm:$0xff]
    %v98 = vld [vmem:[#allocation5 + $0x70] sm:$0xff]
    %v99 = vld [vmem:[#allocation5 + $0x78] sm:$0xff]
    %100 = vmatpush.msra.mxu0 %v99
    %101 = vmatpush.msra.mxu0 %v98
    %102 = vmatpush.msra.mxu0 %v97
    %103 = vmatpush.msra.mxu0 %v96
    %104 = vmatpush.msra.mxu0 %v95
    %105 = vmatpush.msra.mxu0 %v94
    %106 = vmatpush.msra.mxu0 %v93
    %107 = vmatpush.msra.mxu0 %v92
    %108 = vmatpush.msra.mxu0 %v91
    %109 = vmatpush.msra.mxu0 %v90
    %110 = vmatpush.msra.mxu0 %v89
    %111 = vmatpush.msra.mxu0 %v88
    %112 = vmatpush.msra.mxu0 %v87
    %113 = vmatpush.msra.mxu0 %v86
    %114 = vmatpush.msra.mxu0 %v85
    %115 = vmatpush.msra.mxu0 %v84
    %116 = vmatmul.f32.gmra.mxu0 %v83
    %v117 = vpop.f32.mrf.mxu0
    %v118 = vadd.f32 0.0, %v117
    %119 = vdwg.mxu0
    %v120 = vmul.f32 %v118, 0.70710677
    %121 = vst [vmem:[#allocation10] sm:$0xff] %v120
    %v122 = vld [vmem:[#allocation7] sm:$0xff]
    %v123 = vld [vmem:[#allocation7 + $0x8] sm:$0xff]
    %v124 = vld [vmem:[#allocation7 + $0x10] sm:$0xff]
    %v125 = vld [vmem:[#allocation7 + $0x18] sm:$0xff]
    %v126 = vld [vmem:[#allocation7 + $0x20] sm:$0xff]
    %v127 = vld [vmem:[#allocation7 + $0x28] sm:$0xff]
    %v128 = vld [vmem:[#allocation7 + $0x30] sm:$0xff]
    %v129 = vld [vmem:[#allocation7 + $0x38] sm:$0xff]
    %v130 = vld [vmem:[#allocation7 + $0x40] sm:$0xff]
    %v131 = vld [vmem:[#allocation7 + $0x48] sm:$0xff]
    %v132 = vld [vmem:[#allocation7 + $0x50] sm:$0xff]
    %v133 = vld [vmem:[#allocation7 + $0x58] sm:$0xff]
    %v134 = vld [vmem:[#allocation7 + $0x60] sm:$0xff]
    %v135 = vld [vmem:[#allocation7 + $0x68] sm:$0xff]
    %v136 = vld [vmem:[#allocation7 + $0x70] sm:$0xff]
    %v137 = vld [vmem:[#allocation7 + $0x78] sm:$0xff]
    %138 = vmatpush.msra.mxu0 %v137
    %139 = vmatpush.msra.mxu0 %v136
    %140 = vmatpush.msra.mxu0 %v135
    %141 = vmatpush.msra.mxu0 %v134
    %142 = vmatpush.msra.mxu0 %v133
    %143 = vmatpush.msra.mxu0 %v132
    %144 = vmatpush.msra.mxu0 %v131
    %145 = vmatpush.msra.mxu0 %v130
    %146 = vmatpush.msra.mxu0 %v129
    %147 = vmatpush.msra.mxu0 %v128
    %148 = vmatpush.msra.mxu0 %v127
    %149 = vmatpush.msra.mxu0 %v126
    %150 = vmatpush.msra.mxu0 %v125
    %151 = vmatpush.msra.mxu0 %v124
    %152 = vmatpush.msra.mxu0 %v123
    %153 = vmatpush.msra.mxu0 %v122
    %154 = vmatmul.f32.gmra.mxu0 %v83
    %v155 = vpop.f32.mrf.mxu0
    %v156 = vadd.f32 0.0, %v155
    %157 = vdwg.mxu0
    %158 = vst [vmem:[#allocation11] sm:$0xff] %v156
    %v159 = vld [vmem:[#allocation8] sm:$0xff]
    %v160 = vld [vmem:[#allocation8 + $0x8] sm:$0xff]
    %v161 = vld [vmem:[#allocation8 + $0x10] sm:$0xff]
    %v162 = vld [vmem:[#allocation8 + $0x18] sm:$0xff]
    %v163 = vld [vmem:[#allocation8 + $0x20] sm:$0xff]
    %v164 = vld [vmem:[#allocation8 + $0x28] sm:$0xff]
    %v165 = vld [vmem:[#allocation8 + $0x30] sm:$0xff]
    %v166 = vld [vmem:[#allocation8 + $0x38] sm:$0xff]
    %v167 = vld [vmem:[#allocation8 + $0x40] sm:$0xff]
    %v168 = vld [vmem:[#allocation8 + $0x48] sm:$0xff]
    %v169 = vld [vmem:[#allocation8 + $0x50] sm:$0xff]
    %v170 = vld [vmem:[#allocation8 + $0x58] sm:$0xff]
    %v171 = vld [vmem:[#allocation8 + $0x60] sm:$0xff]
    %v172 = vld [vmem:[#allocation8 + $0x68] sm:$0xff]
    %v173 = vld [vmem:[#allocation8 + $0x70] sm:$0xff]
    %v174 = vld [vmem:[#allocation8 + $0x78] sm:$0xff]
    %175 = vmatpush.msra.mxu0 %v174
    %176 = vmatpush.msra.mxu0 %v173
    %177 = vmatpush.msra.mxu0 %v172
    %178 = vmatpush.msra.mxu0 %v171
    %179 = vmatpush.msra.mxu0 %v170
    %180 = vmatpush.msra.mxu0 %v169
    %181 = vmatpush.msra.mxu0 %v168
    %182 = vmatpush.msra.mxu0 %v167
    %183 = vmatpush.msra.mxu0 %v166
    %184 = vmatpush.msra.mxu0 %v165
    %185 = vmatpush.msra.mxu0 %v164
    %186 = vmatpush.msra.mxu0 %v163
    %187 = vmatpush.msra.mxu0 %v162
    %188 = vmatpush.msra.mxu0 %v161
    %189 = vmatpush.msra.mxu0 %v160
    %190 = vmatpush.msra.mxu0 %v159
    %191 = vmatmul.f32.gmra.mxu0 %v83
    %v192 = vpop.f32.mrf.mxu0
    %v193 = vadd.f32 0.0, %v192
    %194 = vdwg.mxu0
    %195 = vst [vmem:[#allocation13] sm:$0xff] %v193
    // Predicated region
    $region34: #{tpu_custom_call.1} parent=1 // pred_check
      _
    $region35: #{tpu_custom_call.1} parent=1 // pred_check_branch
      %197 = sbr.rel (0) target = $region37
    $region36: #{tpu_custom_call.1} parent=1 // pred_region
      %199 = vsyncadd [#allocation4], 0
      %s201 = sshll.u32 [#allocation10], 4
      %s202 = int_to_ptr.vmem [resolvable:$true] %s201
      %s203 = sshll.u32 %s4, 4
      %s204 = int_to_ptr.hbm [resolvable:$true] %s203
      %206 = dma.vmem_to_hbm [thread:$0]  %s202, 128, %s204, [#allocation4]
    $region37: #{tpu_custom_call.1} parent=1 // pred_fallthru
      _
    // Predicated region
    $region38: #{tpu_custom_call.1} parent=1 // pred_check
      _
    $region39: #{tpu_custom_call.1} parent=1 // pred_check_branch
      %208 = sbr.rel (0) target = $region41
    $region40: #{tpu_custom_call.1} parent=1 // pred_region
      %210 = vsyncadd [#allocation12], 0
      %s212 = sshll.u32 [#allocation11], 4
      %s213 = int_to_ptr.vmem [resolvable:$true] %s212
      %s214 = sshll.u32 %s5, 4
      %s215 = int_to_ptr.hbm [resolvable:$true] %s214
      %217 = dma.vmem_to_hbm [thread:$0]  %s213, 128, %s215, [#allocation12]
    $region41: #{tpu_custom_call.1} parent=1 // pred_fallthru
      _
    // Predicated region
    $region42: #{tpu_custom_call.1} parent=1 // pred_check
      _
    $region43: #{tpu_custom_call.1} parent=1 // pred_check_branch
      %219 = sbr.rel (0) target = $region45
    $region44: #{tpu_custom_call.1} parent=1 // pred_region
      %221 = vsyncadd [#allocation12], 0
      %s223 = sshll.u32 [#allocation13], 4
      %s224 = int_to_ptr.vmem [resolvable:$true] %s223
      %s225 = sshll.u32 %s6, 4
      %s226 = int_to_ptr.hbm [resolvable:$true] %s225
      %228 = dma.vmem_to_hbm [thread:$0]  %s224, 128, %s226, [#allocation12]
    $region45: #{tpu_custom_call.1} parent=1 // pred_fallthru
      _
    // Predicated region
    $region46: #{tpu_custom_call.1} parent=1 // pred_check
      _
    $region47: #{tpu_custom_call.1} parent=1 // pred_check_branch
      %230 = sbr.rel (0) target = $region49
    $region48: #{tpu_custom_call.1} parent=1 // pred_region
      %232 = dma.done [#allocation4], 128
    $region49: #{tpu_custom_call.1} parent=1 // pred_fallthru
      _
    // Predicated region
    $region50: #{tpu_custom_call.1} parent=1 // pred_check
      _
    $region51: #{tpu_custom_call.1} parent=1 // pred_check_branch
      %234 = sbr.rel (0) target = $region53
    $region52: #{tpu_custom_call.1} parent=1 // pred_region
      %236 = dma.done [#allocation12], 128
    $region53: #{tpu_custom_call.1} parent=1 // pred_fallthru
      _
    // Predicated region
    $region54: #{tpu_custom_call.1} parent=1 // pred_check
      _
    $region55: #{tpu_custom_call.1} parent=1 // pred_check_branch
      %238 = sbr.rel (0) target = $region57
    $region56: #{tpu_custom_call.1} parent=1 // pred_region
      %240 = dma.done [#allocation12], 128
    $region57: #{tpu_custom_call.1} parent=1 // pred_fallthru
      _
    %241 = vsyncpa [#allocation3], 1
    %242 = vsyncpa [#allocation6], 1
    %243 = vsyncpa [#allocation9], 1
    %244 = vsyncpa [#allocation4], 1
    %245 = vsyncpa [#allocation12], 1

</llo_original>
